<compile_context>
chip_gen: v6e
topology: v6e:2x2x1
jax: 0.10.0
libtpu: 0.0.40
codegen_flags: <defaults>
</compile_context>

<pallas_src>
import functools

import jax
import jax.numpy as jnp
from jax import lax
from jax.experimental import pallas as pl
from jax.experimental.pallas import tpu as pltpu


# ---------------------------------------------------------------------------
# Fused kernel: deconv(k=2,s=2) + CA gating + channel concat
# ---------------------------------------------------------------------------
def _fused_up_kernel(x_ref, s_ref, wd_ref, bd_ref, wg_ref, bg_ref, wl_ref, bl_ref,
                     o_ref, *, ew_dtype):
    """Channels-first layout, flattened spatial on the lane axis.

      x_ref : (Cin, TS)       input pixels of this spatial tile
      s_ref : (4, C, TS)      skip, de-interleaved per 2x2 sub-pixel (k = di*2 + dj)
      wd_ref: (4C, Cin)       deconv weights, all 4 sub-pixels stacked on rows
      bd_ref: (4C, 1)         deconv bias tiled over sub-pixels (f32)
      wg_ref: (3C, C)         gate weight (one merged matmul -> g1/g2/g3 row blocks)
      bg_ref: (3C, 1)         gate bias (f32)
      wl_ref: (C, C)          linear weight
      bl_ref: (C, 1)          linear bias (f32)
      o_ref : (2, 4, C, TS)   output: [0] = upsampled x, [1] = gated skip
    """
    C = o_ref.shape[2]
    TS = o_ref.shape[3]

    x = x_ref[...]                       # (Cin, TS), activation dtype
    act_dtype = x.dtype

    # --- ConvTranspose2d(k=2,s=2): ONE batched MXU matmul for all 4 sub-pixels ---
    y_all = jnp.dot(wd_ref[...], x, preferred_element_type=jnp.float32) + bd_ref[...]
    o_ref[0] = y_all.reshape(4, C, TS).astype(o_ref.dtype)   # single contiguous store

    # --- hoisted loop-invariant weight / bias loads ---
    wg = wg_ref[...]                     # (3C, C)
    wl = wl_ref[...]                     # (C, C)
    bg = bg_ref[...]                     # (3C, 1) f32
    bl = bl_ref[...]                     # (C, 1)  f32

    def body(k, carry):
        # re-read the upsampled activations from the output block (already in VMEM);
        # keeps the big (4C, TS) deconv result out of the live set of this loop.
        y_k = o_ref[0, k]                                    # (C, TS), act dtype
        sk = s_ref[k].astype(ew_dtype)                       # (C, TS)

        # all three gates in a single (3C, C) @ (C, TS) matmul; row-block slices
        g = jnp.dot(wg, y_k, preferred_element_type=jnp.float32) + bg
        g1 = g[0:C, :]
        g2 = g[C:2 * C, :].astype(ew_dtype)
        g3 = g[2 * C:3 * C, :].astype(ew_dtype)

        lin = jnp.dot(wl, (g1.astype(ew_dtype) + sk).astype(act_dtype),
                      preferred_element_type=jnp.float32) + bl

        s_new = (jax.nn.sigmoid(lin.astype(ew_dtype)) * sk
                 + jax.nn.sigmoid(g2) * jnp.tanh(g3))
        s_new = jnp.where(s_new >= 0, s_new, 0.01 * s_new)   # LeakyReLU(0.01)

        o_ref[1, k] = s_new.astype(o_ref.dtype)
        return carry

    lax.fori_loop(0, 4, body, 0)


# ---------------------------------------------------------------------------
# Helpers
# ---------------------------------------------------------------------------
def _round_up(x, m):
    return ((x + m - 1) // m) * m


def _vmem_capacity_bytes():
    try:
        return int(pltpu.get_tpu_info().vmem_capacity_bytes)
    except Exception:
        return 64 << 20      # conservative (v7x-sized) fallback


def _supports_bf16_elementwise():
    """bf16 VPU/EUP exists on v6e (Trillium) and later; v5e/v4 must use f32."""
    try:
        kind = jax.devices()[0].device_kind.lower()
    except Exception:
        return False
    return any(tag in kind for tag in ("v6", "v7", "7x", "trillium", "ironwood"))


# ---------------------------------------------------------------------------
# Full `Up.forward` wrapper
# ---------------------------------------------------------------------------
def up_forward(x_nchw, skip_nchw, params, *, elementwise_dtype=None):
    """x: (B, Cin, H, W), skip: (B, C, 2H, 2W) -> (B, 2C, 2H, 2W) = cat([up(x), gated skip])."""
    B, Cin, H, W = x_nchw.shape
    C = params["deconv_w"].shape[1]
    HW = H * W
    act_dtype = x_nchw.dtype
    itemsize = jnp.dtype(act_dtype).itemsize

    if elementwise_dtype is None:
        elementwise_dtype = (jnp.bfloat16
                             if (act_dtype == jnp.bfloat16 and _supports_bf16_elementwise())
                             else jnp.float32)

    # ---- VMEM budget: double-buffered blocks + (double-buffered) weights + f32 temps ----
    weight_bytes = (4 * C * Cin + 3 * C * C + C * C) * itemsize + (8 * C) * 4
    block_bytes_per_lane = (Cin + 4 * C + 8 * C) * itemsize     # x + skip + out blocks
    temp_bytes_per_lane = 12 * C * 4                            # live f32 intermediates (est.)
    vmem_cap = _vmem_capacity_bytes()
    budget = min(int(vmem_cap * 3) // 4, 96 << 20)              # ~48 MiB on v7x, 96 MiB v5e/v6e
    avail = max(budget - 2 * weight_bytes - (2 << 20), 4 << 20)
    cap_lanes = max(128, avail // (2 * block_bytes_per_lane + temp_bytes_per_lane))
    cap_lanes -= cap_lanes % 128
    cap_lanes = max(128, cap_lanes)

    # ---- lane-dense tiles: TS is always a multiple of 128; pad HW instead of masking ----
    TS = int(min(cap_lanes, _round_up(HW, 128)))
    n_tiles = pl.cdiv(HW, TS)
    HW_pad = n_tiles * TS
    vmem_limit = int(min(budget,
                         2 * weight_bytes
                         + (2 * block_bytes_per_lane + temp_bytes_per_lane) * TS
                         + (4 << 20)))
    vmem_limit = max(vmem_limit, 16 << 20)

    # ---- layouts: channels-first, flattened spatial on the lane axis ----
    x_f = x_nchw.reshape(B, Cin, HW)                            # free reshape, no transpose
    # skip_r[b, di*2+dj, c, i*W+j] = skip[b, c, 2i+di, 2j+dj]   (one XLA transpose)
    skip_r = (skip_nchw.reshape(B, C, H, 2, W, 2)
              .transpose(0, 3, 5, 1, 2, 4)
              .reshape(B, 4, C, HW))
    if HW_pad != HW:
        pad = HW_pad - HW
        x_f = jnp.pad(x_f, ((0, 0), (0, 0), (0, pad)))
        skip_r = jnp.pad(skip_r, ((0, 0), (0, 0), (0, 0), (0, pad)))

    # ---- weights: pre-transposed / pre-stacked (tiny, grid-invariant) ----
    wd_all = (jnp.transpose(params["deconv_w"], (2, 3, 1, 0))   # torch (Cin, C, 2, 2)
              .reshape(4 * C, Cin).astype(act_dtype))
    bd_all = jnp.tile(params["deconv_b"], 4).reshape(4 * C, 1).astype(jnp.float32)
    wg = params["gate_w"].astype(act_dtype)                     # (3C, C)
    bg = params["gate_b"].reshape(3 * C, 1).astype(jnp.float32)
    wl = params["lin_w"].astype(act_dtype)                      # (C, C)
    bl = params["lin_b"].reshape(C, 1).astype(jnp.float32)

    kernel = functools.partial(_fused_up_kernel, ew_dtype=elementwise_dtype)

    out_k = pl.pallas_call(
        kernel,
        out_shape=jax.ShapeDtypeStruct((B, 2, 4, C, HW_pad), act_dtype),
        grid_spec=pltpu.PrefetchScalarGridSpec(
            num_scalar_prefetch=0,
            grid=(B, n_tiles),
            in_specs=[
                pl.BlockSpec((None, Cin, TS), lambda b, t: (b, 0, t)),
                pl.BlockSpec((None, 4, C, TS), lambda b, t: (b, 0, 0, t)),
                pl.BlockSpec((4 * C, Cin), lambda b, t: (0, 0)),
                pl.BlockSpec((4 * C, 1), lambda b, t: (0, 0)),
                pl.BlockSpec((3 * C, C), lambda b, t: (0, 0)),
                pl.BlockSpec((3 * C, 1), lambda b, t: (0, 0)),
                pl.BlockSpec((C, C), lambda b, t: (0, 0)),
                pl.BlockSpec((C, 1), lambda b, t: (0, 0)),
            ],
            out_specs=pl.BlockSpec((None, 2, 4, C, TS), lambda b, t: (b, 0, 0, 0, t)),
        ),
        compiler_params=pltpu.CompilerParams(
            dimension_semantics=("parallel", "parallel"),
            vmem_limit_bytes=vmem_limit,
        ),
    )(x_f, skip_r, wd_all, bd_all, wg, bg, wl, bl)

    # Drop spatial padding, then one layout pass back to NCHW:
    # out_k[b, p, di*2+dj, c, i*W+j] -> out[b, p*C + c, 2i+di, 2j+dj]
    out_k = out_k[..., :HW]
    out = (out_k.reshape(B, 2, 2, 2, C, H, W)
           .transpose(0, 1, 4, 5, 2, 6, 3)
           .reshape(B, 2 * C, 2 * H, 2 * W))
    return out


# ---------------------------------------------------------------------------
# Pure-JAX reference (same math, no Pallas) for a sanity check
# ---------------------------------------------------------------------------
def up_forward_ref(x_nchw, skip_nchw, p):
    prec = jax.lax.Precision.HIGHEST
    x = jnp.transpose(x_nchw, (0, 2, 3, 1))
    skip = jnp.transpose(skip_nchw, (0, 2, 3, 1))
    B, H, W, Cin = x.shape
    Cout = p["deconv_w"].shape[1]
    y = jnp.einsum("bhwi,iodk->bhwdko", x, p["deconv_w"], precision=prec) + p["deconv_b"]
    y = jnp.transpose(y, (0, 1, 3, 2, 4, 5)).reshape(B, 2 * H, 2 * W, Cout)
    gate = jnp.einsum("bhwc,oc->bhwo", y, p["gate_w"], precision=prec) + p["gate_b"]
    g1, g2, g3 = gate[..., :Cout], gate[..., Cout:2 * Cout], gate[..., 2 * Cout:]
    lin = jnp.einsum("bhwc,oc->bhwo", g1 + skip, p["lin_w"], precision=prec) + p["lin_b"]
    s = jax.nn.sigmoid(lin) * skip + jax.nn.sigmoid(g2) * jnp.tanh(g3)
    s = jnp.where(s >= 0, s, 0.01 * s)
    out = jnp.concatenate([y, s], axis=-1)
    return jnp.transpose(out, (0, 3, 1, 2))


if __name__ == "__main__":
    # small shapes: batch=2, in_channels=16, out_channels=8 (multiple of 8 for clean
    # sublane slices / stores), spatial 8x8 -> upsampled 16x16
    B, Cin, Cout, H, W = 2, 16, 8, 8, 8

    key = jax.random.PRNGKey(0)
    k = jax.random.split(key, 8)
    x_nchw = jax.random.normal(k[0], (B, Cin, H, W), jnp.float32)
    skip_nchw = jax.random.normal(k[1], (B, Cout, 2 * H, 2 * W), jnp.float32)

    params = {
        # ConvTranspose2d weight: (in_channels, out_channels, kH, kW)
        "deconv_w": 0.1 * jax.random.normal(k[2], (Cin, Cout, 2, 2), jnp.float32),
        "deconv_b": 0.1 * jax.random.normal(k[3], (Cout,), jnp.float32),
        # nn.Linear(dim, 3*dim): weight (3C, C), bias (3C,)
        "gate_w": 0.1 * jax.random.normal(k[4], (3 * Cout, Cout), jnp.float32),
        "gate_b": 0.1 * jax.random.normal(k[5], (3 * Cout,), jnp.float32),
        # nn.Linear(dim, dim): weight (C, C), bias (C,)
        "lin_w": 0.1 * jax.random.normal(k[6], (Cout, Cout), jnp.float32),
        "lin_b": 0.1 * jax.random.normal(k[7], (Cout,), jnp.float32),
    }

    # f32 path: element-wise math stays f32 everywhere
    out = jax.block_until_ready(up_forward(x_nchw, skip_nchw, params))
    ref = jax.block_until_ready(up_forward_ref(x_nchw, skip_nchw, params))
    assert out.shape == (B, 2 * Cout, 2 * H, 2 * W), out.shape
    assert jnp.allclose(out, ref, atol=1e-4, rtol=1e-4), "f32 mismatch vs reference"

    # bf16 activation path: bf16 MXU + (on v6e/v7x) bf16 element-wise gating;
    # falls back to f32 element-wise on chips without bf16 VPU/EUP (v5e and older).
    out_bf16 = jax.block_until_ready(
        up_forward(x_nchw.astype(jnp.bfloat16), skip_nchw.astype(jnp.bfloat16), params))
    assert out_bf16.shape == ref.shape
    out_bf16_f32 = out_bf16.astype(jnp.float32)
    assert bool(jnp.isfinite(out_bf16_f32).all())
    assert jnp.allclose(out_bf16_f32, ref, atol=0.25, rtol=0.25), "bf16 mismatch vs reference"

    print("KERNEL_OK")
</pallas_src>

<mosaic_0001>
module attributes {stable_mosaic.version = 11 : i64} {
  func.func @_fused_up_kernel(%arg0: i32, %arg1: i32, %arg2: memref<1x16x128xf32, #tpu.memory_space<vmem>>, %arg3: memref<1x4x8x128xf32, #tpu.memory_space<vmem>>, %arg4: memref<32x16xf32, #tpu.memory_space<vmem>>, %arg5: memref<32x1xf32, #tpu.memory_space<vmem>>, %arg6: memref<24x8xf32, #tpu.memory_space<vmem>>, %arg7: memref<24x1xf32, #tpu.memory_space<vmem>>, %arg8: memref<8x8xf32, #tpu.memory_space<vmem>>, %arg9: memref<8x1xf32, #tpu.memory_space<vmem>>, %arg10: memref<1x2x4x8x128xf32, #tpu.memory_space<vmem>>) attributes {dimension_semantics = [#tpu.dimension_semantics<parallel>, #tpu.dimension_semantics<parallel>], iteration_bounds = array<i64: 2, 1>, scalar_prefetch = 0 : i64, scratch_operands = 0 : i64, tpu.core_type = #tpu.core_type<tc>, window_params = [{transform_indices = @transform_0, window_bounds = array<i64: 1, 16, 128>}, {transform_indices = @transform_1, window_bounds = array<i64: 1, 4, 8, 128>}, {pipeline_mode = #tpu.pipeline_mode<synchronous>, transform_indices = @transform_2, window_bounds = array<i64: 32, 16>}, {pipeline_mode = #tpu.pipeline_mode<synchronous>, transform_indices = @transform_3, window_bounds = array<i64: 32, 1>}, {pipeline_mode = #tpu.pipeline_mode<synchronous>, transform_indices = @transform_4, window_bounds = array<i64: 24, 8>}, {pipeline_mode = #tpu.pipeline_mode<synchronous>, transform_indices = @transform_5, window_bounds = array<i64: 24, 1>}, {pipeline_mode = #tpu.pipeline_mode<synchronous>, transform_indices = @transform_6, window_bounds = array<i64: 8, 8>}, {pipeline_mode = #tpu.pipeline_mode<synchronous>, transform_indices = @transform_7, window_bounds = array<i64: 8, 1>}, {transform_indices = @transform_8, window_bounds = array<i64: 1, 2, 4, 8, 128>}]} {
    %c0 = arith.constant 0 : index
    %c0_0 = arith.constant 0 : index
    %c0_1 = arith.constant 0 : index
    %0 = vector.load %arg2[%c0, %c0_0, %c0_1] : memref<1x16x128xf32, #tpu.memory_space<vmem>>, vector<1x16x128xf32>
    %1 = vector.shape_cast %0 : vector<1x16x128xf32> to vector<16x128xf32>
    %c0_2 = arith.constant 0 : index
    %c0_3 = arith.constant 0 : index
    %2 = vector.load %arg4[%c0_2, %c0_3] : memref<32x16xf32, #tpu.memory_space<vmem>>, vector<32x16xf32>
    %cst = arith.constant dense<0.000000e+00> : vector<32x128xf32>
    %3 = tpu.matmul %2, %1, %cst {dimension_numbers = #tpu.dot_dimension_numbers<[1], [0], [0], [1], [0, 0, 1, 1], [], []>} : vector<32x16xf32>, vector<16x128xf32>, vector<32x128xf32> -> vector<32x128xf32>
    %c0_4 = arith.constant 0 : index
    %c0_5 = arith.constant 0 : index
    %4 = vector.load %arg5[%c0_4, %c0_5] : memref<32x1xf32, #tpu.memory_space<vmem>>, vector<32x1xf32>
    %5 = vector.broadcast %4 : vector<32x1xf32> to vector<32x128xf32>
    %6 = arith.addf %3, %5 : vector<32x128xf32>
    %7 = vector.shape_cast %6 : vector<32x128xf32> to vector<4x8x128xf32>
    %c0_6 = arith.constant 0 : index
    %c0_7 = arith.constant 0 : index
    %c0_8 = arith.constant 0 : index
    %c0_9 = arith.constant 0 : index
    %c0_10 = arith.constant 0 : index
    %8 = vector.load %arg10[%c0_6, %c0_7, %c0_8, %c0_9, %c0_10] : memref<1x2x4x8x128xf32, #tpu.memory_space<vmem>>, vector<1x1x4x8x128xf32>
    %9 = vector.shape_cast %8 : vector<1x1x4x8x128xf32> to vector<4x8x128xf32>
    %10 = vector.shape_cast %7 : vector<4x8x128xf32> to vector<1x1x4x8x128xf32>
    tpu.vector_store %arg10[%c0_6, %c0_7, %c0_8, %c0_9, %c0_10], %10 {strides = array<i32>} : memref<1x2x4x8x128xf32, #tpu.memory_space<vmem>>, vector<1x1x4x8x128xf32>,
    %c0_11 = arith.constant 0 : index
    %c0_12 = arith.constant 0 : index
    %11 = vector.load %arg6[%c0_11, %c0_12] : memref<24x8xf32, #tpu.memory_space<vmem>>, vector<24x8xf32>
    %c0_13 = arith.constant 0 : index
    %c0_14 = arith.constant 0 : index
    %12 = vector.load %arg8[%c0_13, %c0_14] : memref<8x8xf32, #tpu.memory_space<vmem>>, vector<8x8xf32>
    %c0_15 = arith.constant 0 : index
    %c0_16 = arith.constant 0 : index
    %13 = vector.load %arg7[%c0_15, %c0_16] : memref<24x1xf32, #tpu.memory_space<vmem>>, vector<24x1xf32>
    %c0_17 = arith.constant 0 : index
    %c0_18 = arith.constant 0 : index
    %14 = vector.load %arg9[%c0_17, %c0_18] : memref<8x1xf32, #tpu.memory_space<vmem>>, vector<8x1xf32>
    %c0_i32 = arith.constant 0 : i32
    %c4_i32 = arith.constant 4 : i32
    %15 = arith.addi %c0_i32, %c4_i32 : i32
    %c1_i32 = arith.constant 1 : i32
    scf.for %arg11 = %c0_i32 to %15 step %c1_i32  : i32 {
      %c0_20 = arith.constant 0 : index
      %c0_21 = arith.constant 0 : index
      %16 = arith.index_cast %arg11 : i32 to index
      %c0_22 = arith.constant 0 : index
      %c0_23 = arith.constant 0 : index
      %17 = vector.load %arg10[%c0_20, %c0_21, %16, %c0_22, %c0_23] : memref<1x2x4x8x128xf32, #tpu.memory_space<vmem>>, vector<1x1x1x8x128xf32>
      %18 = vector.shape_cast %17 : vector<1x1x1x8x128xf32> to vector<8x128xf32>
      %c0_24 = arith.constant 0 : index
      %19 = arith.index_cast %arg11 : i32 to index
      %c0_25 = arith.constant 0 : index
      %c0_26 = arith.constant 0 : index
      %20 = vector.load %arg3[%c0_24, %19, %c0_25, %c0_26] : memref<1x4x8x128xf32, #tpu.memory_space<vmem>>, vector<1x1x8x128xf32>
      %21 = vector.shape_cast %20 : vector<1x1x8x128xf32> to vector<8x128xf32>
      %cst_27 = arith.constant dense<0.000000e+00> : vector<24x128xf32>
      %22 = tpu.matmul %11, %18, %cst_27 {dimension_numbers = #tpu.dot_dimension_numbers<[1], [0], [0], [1], [0, 0, 1, 1], [], []>} : vector<24x8xf32>, vector<8x128xf32>, vector<24x128xf32> -> vector<24x128xf32>
      %23 = vector.broadcast %13 : vector<24x1xf32> to vector<24x128xf32>
      %24 = arith.addf %22, %23 : vector<24x128xf32>
      %25 = vector.extract_strided_slice %24 {offsets = [0, 0], sizes = [8, 128], strides = [1, 1]} : vector<24x128xf32> to vector<8x128xf32>
      %26 = vector.extract_strided_slice %24 {offsets = [8, 0], sizes = [8, 128], strides = [1, 1]} : vector<24x128xf32> to vector<8x128xf32>
      %27 = vector.extract_strided_slice %24 {offsets = [16, 0], sizes = [8, 128], strides = [1, 1]} : vector<24x128xf32> to vector<8x128xf32>
      %28 = arith.addf %25, %21 : vector<8x128xf32>
      %cst_28 = arith.constant dense<0.000000e+00> : vector<8x128xf32>
      %29 = tpu.matmul %12, %28, %cst_28 {dimension_numbers = #tpu.dot_dimension_numbers<[1], [0], [0], [1], [0, 0, 1, 1], [], []>} : vector<8x8xf32>, vector<8x128xf32>, vector<8x128xf32> -> vector<8x128xf32>
      %30 = vector.broadcast %14 : vector<8x1xf32> to vector<8x128xf32>
      %31 = arith.addf %29, %30 : vector<8x128xf32>
      %32 = arith.negf %31 : vector<8x128xf32>
      %33 = math.exp %32 : vector<8x128xf32>
      %cst_29 = arith.constant 1.000000e+00 : f32
      %34 = vector.broadcast %cst_29 : f32 to vector<8x128xf32>
      %35 = arith.addf %34, %33 : vector<8x128xf32>
      %36 = arith.divf %34, %35 : vector<8x128xf32>
      %37 = arith.mulf %36, %21 : vector<8x128xf32>
      %38 = arith.negf %26 : vector<8x128xf32>
      %39 = math.exp %38 : vector<8x128xf32>
      %cst_30 = arith.constant 1.000000e+00 : f32
      %40 = vector.broadcast %cst_30 : f32 to vector<8x128xf32>
      %41 = arith.addf %40, %39 : vector<8x128xf32>
      %42 = arith.divf %40, %41 : vector<8x128xf32>
      %43 = math.tanh %27 : vector<8x128xf32>
      %44 = arith.mulf %42, %43 : vector<8x128xf32>
      %45 = arith.addf %37, %44 : vector<8x128xf32>
      %cst_31 = arith.constant 0.000000e+00 : f32
      %46 = vector.broadcast %cst_31 : f32 to vector<8x128xf32>
      %47 = arith.cmpf oge, %45, %46 : vector<8x128xf32>
      %cst_32 = arith.constant 0.00999999977 : f32
      %48 = vector.broadcast %cst_32 : f32 to vector<8x128xf32>
      %49 = arith.mulf %48, %45 : vector<8x128xf32>
      %50 = arith.select %47, %45, %49 : vector<8x128xi1>, vector<8x128xf32>
      %c0_33 = arith.constant 0 : index
      %c1 = arith.constant 1 : index
      %51 = arith.index_cast %arg11 : i32 to index
      %c0_34 = arith.constant 0 : index
      %c0_35 = arith.constant 0 : index
      %52 = vector.load %arg10[%c0_33, %c1, %51, %c0_34, %c0_35] : memref<1x2x4x8x128xf32, #tpu.memory_space<vmem>>, vector<1x1x1x8x128xf32>
      %53 = vector.shape_cast %52 : vector<1x1x1x8x128xf32> to vector<8x128xf32>
      %54 = vector.shape_cast %50 : vector<8x128xf32> to vector<1x1x1x8x128xf32>
      tpu.vector_store %arg10[%c0_33, %c1, %51, %c0_34, %c0_35], %54 {strides = array<i32>} : memref<1x2x4x8x128xf32, #tpu.memory_space<vmem>>, vector<1x1x1x8x128xf32>,
    }
    %c4_i32_19 = arith.constant 4 : i32
    return
  }
  func.func @transform_0(%arg0: i32, %arg1: i32) -> (i32, i32, i32) {
    %c0_i32 = arith.constant 0 : i32
    %c0_i32_0 = arith.constant 0 : i32
    return %arg0, %c0_i32, %arg1 : i32, i32, i32
  }
  func.func @transform_1(%arg0: i32, %arg1: i32) -> (i32, i32, i32, i32) {
    %c0_i32 = arith.constant 0 : i32
    %c0_i32_0 = arith.constant 0 : i32
    %c0_i32_1 = arith.constant 0 : i32
    return %arg0, %c0_i32, %c0_i32_0, %arg1 : i32, i32, i32, i32
  }
  func.func @transform_2(%arg0: i32, %arg1: i32) -> (i32, i32) {
    %c0_i32 = arith.constant 0 : i32
    %c0_i32_0 = arith.constant 0 : i32
    %c0_i32_1 = arith.constant 0 : i32
    return %c0_i32, %c0_i32_0 : i32, i32
  }
  func.func @transform_3(%arg0: i32, %arg1: i32) -> (i32, i32) {
    %c0_i32 = arith.constant 0 : i32
    %c0_i32_0 = arith.constant 0 : i32
    %c0_i32_1 = arith.constant 0 : i32
    return %c0_i32, %c0_i32_0 : i32, i32
  }
  func.func @transform_4(%arg0: i32, %arg1: i32) -> (i32, i32) {
    %c0_i32 = arith.constant 0 : i32
    %c0_i32_0 = arith.constant 0 : i32
    %c0_i32_1 = arith.constant 0 : i32
    return %c0_i32, %c0_i32_0 : i32, i32
  }
  func.func @transform_5(%arg0: i32, %arg1: i32) -> (i32, i32) {
    %c0_i32 = arith.constant 0 : i32
    %c0_i32_0 = arith.constant 0 : i32
    %c0_i32_1 = arith.constant 0 : i32
    return %c0_i32, %c0_i32_0 : i32, i32
  }
  func.func @transform_6(%arg0: i32, %arg1: i32) -> (i32, i32) {
    %c0_i32 = arith.constant 0 : i32
    %c0_i32_0 = arith.constant 0 : i32
    %c0_i32_1 = arith.constant 0 : i32
    return %c0_i32, %c0_i32_0 : i32, i32
  }
  func.func @transform_7(%arg0: i32, %arg1: i32) -> (i32, i32) {
    %c0_i32 = arith.constant 0 : i32
    %c0_i32_0 = arith.constant 0 : i32
    %c0_i32_1 = arith.constant 0 : i32
    return %c0_i32, %c0_i32_0 : i32, i32
  }
  func.func @transform_8(%arg0: i32, %arg1: i32) -> (i32, i32, i32, i32, i32) {
    %c0_i32 = arith.constant 0 : i32
    %c0_i32_0 = arith.constant 0 : i32
    %c0_i32_1 = arith.constant 0 : i32
    %c0_i32_2 = arith.constant 0 : i32
    return %arg0, %c0_i32, %c0_i32_0, %c0_i32_1, %arg1 : i32, i32, i32, i32, i32
  }
}

</mosaic_0001>

<llo_original>
// kernel: tpu_custom_call.1
$region0: #{tpu_custom_call.1}
  #allocation0 [shape = 'u32[]', space=smem, size = 0x4, offset = 0x4, fixed_abs, tag = 'smem constant byte address 0x4 - core index']
  #allocation1 [shape = 'u32[144,128]{1,0:T(1,128)}', space=vmem, size = 0x12000, scoped, tag = 'internal scratch']
  %s0 = inlined_call_operand.vmem [shape: f32[2,16,128], index: 0, kind: input, shape index: {}]
  %s1 = inlined_call_operand.vmem [shape: f32[2,4,8,128], index: 1, kind: input, shape index: {}]
  %s2 = inlined_call_operand.vmem [shape: f32[32,16], index: 2, kind: input, shape index: {}]
  %s3 = inlined_call_operand.vmem [shape: f32[32,1], index: 3, kind: input, shape index: {}]
  %s4 = inlined_call_operand.vmem [shape: f32[24,8], index: 4, kind: input, shape index: {}]
  %s5 = inlined_call_operand.vmem [shape: f32[24,1], index: 5, kind: input, shape index: {}]
  %s6 = inlined_call_operand.vmem [shape: f32[8,8], index: 6, kind: input, shape index: {}]
  %s7 = inlined_call_operand.vmem [shape: f32[8,1], index: 7, kind: input, shape index: {}]
  %s8 = inlined_call_operand.hbm [shape: f32[2,2,4,8,128], index: 8, kind: output, shape index: {}]
  %s9 = sld [smem:[#allocation0]]
  $region72: #{tpu_custom_call.1} parent=0
    _
  %s11 = ssub.s32 1, %s9
  %s12 = scalar_select 0, %s11, %s9
  $region1: #{tpu_custom_call.1} parent=0
    #allocation2 [shape = 'u8[65536]{0}', space=vmem, size = 0x10000, scoped, tag = 'output window, operand 0']
    #allocation3 [shape = 's32[2]{0}', space=sflag, size = 0x8, scoped, tag = 'scoped memory for tpu_custom_call.1']
    %13 = vsyncpa [#allocation3], 0
    %s14 = scalar_lea.sflag [#allocation3], 1
    %15 = vsyncpa %s14, 0
    loop: start=0, step=1, limit=4
    $region2: #{tpu_custom_call.1} parent=1 // loop_pre_header
      _
    $region3: #{tpu_custom_call.1} parent=1 // loop_header
      %s17 = sphi 0, %s21
      %p18 = scmp.ge.s32.totalorder %s17, 4
      %s24 = sphi 0, %s36
      %s25 = sphi 0, %s32
      %s26 = sphi 0, %s24
      %s27 = sphi 0, %s25
      %s28 = sphi 0, %s26
      %s29 = sphi 0, %s27
      %s41 = sphi 0, %s43
      %s44 = sphi 0, %s41
      %s45 = sphi 0, %s44
      %s61 = sphi 0, %s45
      %s69 = sphi 0, %s71
      %s72 = sphi 0, %s69
      %s73 = sphi 0, %s72
      %s89 = sphi 0, %s73
      %s93 = sphi 0, %s93
      %s95 = sphi 0, %s93
      %s96 = sphi 0, %s95
      %s110 = sphi 0, %s96
      %s114 = sphi 0, %s114
      %s116 = sphi 0, %s114
      %s117 = sphi 0, %s116
      %s131 = sphi 0, %s117
      %s135 = sphi 0, %s135
      %s137 = sphi 0, %s135
      %s138 = sphi 0, %s137
      %s152 = sphi 0, %s138
      %s156 = sphi 0, %s156
      %s158 = sphi 0, %s156
      %s159 = sphi 0, %s158
      %s173 = sphi 0, %s159
      %s177 = sphi 0, %s177
      %s179 = sphi 0, %s177
      %s180 = sphi 0, %s179
      %s194 = sphi 0, %s180
      %s198 = sphi 0, %s198
      %s200 = sphi 0, %s198
      %s201 = sphi 0, %s200
      %s215 = sphi 0, %s201
      %s223 = sphi 0, %s225
      %s226 = sphi 0, %s223
      %s227 = sphi 0, %s226
      %s243 = sphi 0, %s227
    $region4: #{tpu_custom_call.1} parent=1 // loop_header_branch
      %20 = sbr.rel (%p18) target = $region8
    $region5: #{tpu_custom_call.1} parent=1 // loop_body
      %s22 = ssub.s32 %s17, 1
      %s23 = ssub.s32 %s17, 2
      %s30 = sadd.s32 1, %s25
      %p31 = scmp.ge.s32.totalorder %s30, 1
      %s32 = scalar_select %p31, 0, %s30
      %s33 = sadd.s32 1, %s24
      %s34 = scalar_select %p31, %s33, %s24
      %p35 = scmp.ge.s32.totalorder %s34, 2
      %s36 = scalar_select %p35, 0, %s34
      %s37 = ssub.s32 %s24, %s36
      %s38 = ssub.s32 %s25, %s32
      %s39 = sor.u32 %s37, %s38
      %p40 = scmp.eq.s32.totalorder %s39, 0
      %s42 = sadd.s32 %s41, 1
      %s43 = scalar_select %p40, %s41, %s42
      %p46 = pneg %p40
      %p47 = scmp.eq.s32.totalorder %s17, 1
      %p48 = por %p46, %p47
      %p49 = scmp.ne.s32.totalorder %s41, %s44
      %p50 = scmp.eq.s32.totalorder %s17, 0
      %p51 = por %p49, %p50
      %p52 = scmp.ne.s32.totalorder %s41, %s44
      %p53 = scmp.eq.s32.totalorder %s22, 1
      %p54 = por %p52, %p53
      %p55 = scmp.ne.s32.totalorder %s44, %s45
      %p56 = scmp.eq.s32.totalorder %s22, 0
      %p57 = por %p55, %p56
      %p58 = scmp.ne.s32.totalorder %s44, %s45
      %p59 = scmp.eq.s32.totalorder %s23, 1
      %p60 = por %p58, %p59
      %p62 = scmp.ne.s32.totalorder %s45, %s61
      %p63 = scmp.eq.s32.totalorder %s23, 0
      %p64 = por %p62, %p63
      %s65 = ssub.s32 %s24, %s36
      %s66 = ssub.s32 %s25, %s32
      %s67 = sor.u32 %s65, %s66
      %p68 = scmp.eq.s32.totalorder %s67, 0
      %s70 = sadd.s32 %s69, 1
      %s71 = scalar_select %p68, %s69, %s70
      %p74 = pneg %p68
      %p75 = scmp.eq.s32.totalorder %s17, 1
      %p76 = por %p74, %p75
      %p77 = scmp.ne.s32.totalorder %s69, %s72
      %p78 = scmp.eq.s32.totalorder %s17, 0
      %p79 = por %p77, %p78
      %p80 = scmp.ne.s32.totalorder %s69, %s72
      %p81 = scmp.eq.s32.totalorder %s22, 1
      %p82 = por %p80, %p81
      %p83 = scmp.ne.s32.totalorder %s72, %s73
      %p84 = scmp.eq.s32.totalorder %s22, 0
      %p85 = por %p83, %p84
      %p86 = scmp.ne.s32.totalorder %s72, %s73
      %p87 = scmp.eq.s32.totalorder %s23, 1
      %p88 = por %p86, %p87
      %p90 = scmp.ne.s32.totalorder %s73, %s89
      %p91 = scmp.eq.s32.totalorder %s23, 0
      %p92 = por %p90, %p91
      %s94 = sadd.s32 %s93, 1
      %p97 = scmp.eq.s32.totalorder %s17, 1
      %p98 = scmp.ne.s32.totalorder %s93, %s95
      %p99 = scmp.eq.s32.totalorder %s17, 0
      %p100 = por %p98, %p99
      %p101 = scmp.ne.s32.totalorder %s93, %s95
      %p102 = scmp.eq.s32.totalorder %s22, 1
      %p103 = por %p101, %p102
      %p104 = scmp.ne.s32.totalorder %s95, %s96
      %p105 = scmp.eq.s32.totalorder %s22, 0
      %p106 = por %p104, %p105
      %p107 = scmp.ne.s32.totalorder %s95, %s96
      %p108 = scmp.eq.s32.totalorder %s23, 1
      %p109 = por %p107, %p108
      %p111 = scmp.ne.s32.totalorder %s96, %s110
      %p112 = scmp.eq.s32.totalorder %s23, 0
      %p113 = por %p111, %p112
      %s115 = sadd.s32 %s114, 1
      %p118 = scmp.eq.s32.totalorder %s17, 1
      %p119 = scmp.ne.s32.totalorder %s114, %s116
      %p120 = scmp.eq.s32.totalorder %s17, 0
      %p121 = por %p119, %p120
      %p122 = scmp.ne.s32.totalorder %s114, %s116
      %p123 = scmp.eq.s32.totalorder %s22, 1
      %p124 = por %p122, %p123
      %p125 = scmp.ne.s32.totalorder %s116, %s117
      %p126 = scmp.eq.s32.totalorder %s22, 0
      %p127 = por %p125, %p126
      %p128 = scmp.ne.s32.totalorder %s116, %s117
      %p129 = scmp.eq.s32.totalorder %s23, 1
      %p130 = por %p128, %p129
      %p132 = scmp.ne.s32.totalorder %s117, %s131
      %p133 = scmp.eq.s32.totalorder %s23, 0
      %p134 = por %p132, %p133
      %s136 = sadd.s32 %s135, 1
      %p139 = scmp.eq.s32.totalorder %s17, 1
      %p140 = scmp.ne.s32.totalorder %s135, %s137
      %p141 = scmp.eq.s32.totalorder %s17, 0
      %p142 = por %p140, %p141
      %p143 = scmp.ne.s32.totalorder %s135, %s137
      %p144 = scmp.eq.s32.totalorder %s22, 1
      %p145 = por %p143, %p144
      %p146 = scmp.ne.s32.totalorder %s137, %s138
      %p147 = scmp.eq.s32.totalorder %s22, 0
      %p148 = por %p146, %p147
      %p149 = scmp.ne.s32.totalorder %s137, %s138
      %p150 = scmp.eq.s32.totalorder %s23, 1
      %p151 = por %p149, %p150
      %p153 = scmp.ne.s32.totalorder %s138, %s152
      %p154 = scmp.eq.s32.totalorder %s23, 0
      %p155 = por %p153, %p154
      %s157 = sadd.s32 %s156, 1
      %p160 = scmp.eq.s32.totalorder %s17, 1
      %p161 = scmp.ne.s32.totalorder %s156, %s158
      %p162 = scmp.eq.s32.totalorder %s17, 0
      %p163 = por %p161, %p162
      %p164 = scmp.ne.s32.totalorder %s156, %s158
      %p165 = scmp.eq.s32.totalorder %s22, 1
      %p166 = por %p164, %p165
      %p167 = scmp.ne.s32.totalorder %s158, %s159
      %p168 = scmp.eq.s32.totalorder %s22, 0
      %p169 = por %p167, %p168
      %p170 = scmp.ne.s32.totalorder %s158, %s159
      %p171 = scmp.eq.s32.totalorder %s23, 1
      %p172 = por %p170, %p171
      %p174 = scmp.ne.s32.totalorder %s159, %s173
      %p175 = scmp.eq.s32.totalorder %s23, 0
      %p176 = por %p174, %p175
      %s178 = sadd.s32 %s177, 1
      %p181 = scmp.eq.s32.totalorder %s17, 1
      %p182 = scmp.ne.s32.totalorder %s177, %s179
      %p183 = scmp.eq.s32.totalorder %s17, 0
      %p184 = por %p182, %p183
      %p185 = scmp.ne.s32.totalorder %s177, %s179
      %p186 = scmp.eq.s32.totalorder %s22, 1
      %p187 = por %p185, %p186
      %p188 = scmp.ne.s32.totalorder %s179, %s180
      %p189 = scmp.eq.s32.totalorder %s22, 0
      %p190 = por %p188, %p189
      %p191 = scmp.ne.s32.totalorder %s179, %s180
      %p192 = scmp.eq.s32.totalorder %s23, 1
      %p193 = por %p191, %p192
      %p195 = scmp.ne.s32.totalorder %s180, %s194
      %p196 = scmp.eq.s32.totalorder %s23, 0
      %p197 = por %p195, %p196
      %s199 = sadd.s32 %s198, 1
      %p202 = scmp.eq.s32.totalorder %s17, 1
      %p203 = scmp.ne.s32.totalorder %s198, %s200
      %p204 = scmp.eq.s32.totalorder %s17, 0
      %p205 = por %p203, %p204
      %p206 = scmp.ne.s32.totalorder %s198, %s200
      %p207 = scmp.eq.s32.totalorder %s22, 1
      %p208 = por %p206, %p207
      %p209 = scmp.ne.s32.totalorder %s200, %s201
      %p210 = scmp.eq.s32.totalorder %s22, 0
      %p211 = por %p209, %p210
      %p212 = scmp.ne.s32.totalorder %s200, %s201
      %p213 = scmp.eq.s32.totalorder %s23, 1
      %p214 = por %p212, %p213
      %p216 = scmp.ne.s32.totalorder %s201, %s215
      %p217 = scmp.eq.s32.totalorder %s23, 0
      %p218 = por %p216, %p217
      %s219 = ssub.s32 %s24, %s36
      %s220 = ssub.s32 %s25, %s32
      %s221 = sor.u32 %s219, %s220
      %p222 = scmp.eq.s32.totalorder %s221, 0
      %s224 = sadd.s32 %s223, 1
      %s225 = scalar_select %p222, %s223, %s224
      %p228 = pneg %p222
      %p229 = scmp.eq.s32.totalorder %s17, 1
      %p230 = por %p228, %p229
      %p231 = scmp.ne.s32.totalorder %s223, %s226
      %p232 = scmp.eq.s32.totalorder %s17, 0
      %p233 = por %p231, %p232
      %p234 = scmp.ne.s32.totalorder %s223, %s226
      %p235 = scmp.eq.s32.totalorder %s22, 1
      %p236 = por %p234, %p235
      %p237 = scmp.ne.s32.totalorder %s226, %s227
      %p238 = scmp.eq.s32.totalorder %s22, 0
      %p239 = por %p237, %p238
      %p240 = scmp.ne.s32.totalorder %s226, %s227
      %p241 = scmp.eq.s32.totalorder %s23, 1
      %p242 = por %p240, %p241
      %p244 = scmp.ne.s32.totalorder %s227, %s243
      %p245 = scmp.eq.s32.totalorder %s23, 0
      %p246 = por %p244, %p245
      %p247 = scmp.le.s32.totalorder 1, %s17
      %p248 = scmp.lt.s32.totalorder %s17, 3
      %p249 = pnand %p247, %p248
      %p250 = pneg %p249
      // Predicated region
      $region9: #{tpu_custom_call.1} parent=5 // pred_check
        _
      $region10: #{tpu_custom_call.1} parent=5 // pred_check_branch
        %252 = sbr.rel (%p249) target = $region12
      $region11: #{tpu_custom_call.1} parent=5 // pred_region
        %s253 = ssub.s32 %s17, 1
        // Predicated region
        $region13: #{tpu_custom_call.1} parent=11 // pred_check
          %p254 = pneg %p106
        $region14: #{tpu_custom_call.1} parent=11 // pred_check_branch
          %256 = sbr.rel (%p254) target = $region16
        $region15: #{tpu_custom_call.1} parent=11 // pred_region
          _
        $region16: #{tpu_custom_call.1} parent=11 // pred_fallthru
          _
        // Predicated region
        $region17: #{tpu_custom_call.1} parent=11 // pred_check
          %p257 = pneg %p127
        $region18: #{tpu_custom_call.1} parent=11 // pred_check_branch
          %259 = sbr.rel (%p257) target = $region20
        $region19: #{tpu_custom_call.1} parent=11 // pred_region
          _
        $region20: #{tpu_custom_call.1} parent=11 // pred_fallthru
          _
        // Predicated region
        $region21: #{tpu_custom_call.1} parent=11 // pred_check
          %p260 = pneg %p148
        $region22: #{tpu_custom_call.1} parent=11 // pred_check_branch
          %262 = sbr.rel (%p260) target = $region24
        $region23: #{tpu_custom_call.1} parent=11 // pred_region
          _
        $region24: #{tpu_custom_call.1} parent=11 // pred_fallthru
          _
        // Predicated region
        $region25: #{tpu_custom_call.1} parent=11 // pred_check
          %p263 = pneg %p169
        $region26: #{tpu_custom_call.1} parent=11 // pred_check_branch
          %265 = sbr.rel (%p263) target = $region28
        $region27: #{tpu_custom_call.1} parent=11 // pred_region
          _
        $region28: #{tpu_custom_call.1} parent=11 // pred_fallthru
          _
        // Predicated region
        $region29: #{tpu_custom_call.1} parent=11 // pred_check
          %p266 = pneg %p190
        $region30: #{tpu_custom_call.1} parent=11 // pred_check_branch
          %268 = sbr.rel (%p266) target = $region32
        $region31: #{tpu_custom_call.1} parent=11 // pred_region
          _
        $region32: #{tpu_custom_call.1} parent=11 // pred_fallthru
          _
        // Predicated region
        $region33: #{tpu_custom_call.1} parent=11 // pred_check
          %p269 = pneg %p211
        $region34: #{tpu_custom_call.1} parent=11 // pred_check_branch
          %271 = sbr.rel (%p269) target = $region36
        $region35: #{tpu_custom_call.1} parent=11 // pred_region
          _
        $region36: #{tpu_custom_call.1} parent=11 // pred_fallthru
          _
      $region12: #{tpu_custom_call.1} parent=5 // pred_fallthru
        _
      %p272 = scmp.lt.s32.totalorder %s17, 2
      // Predicated region
      $region37: #{tpu_custom_call.1} parent=5 // pred_check
        %p273 = pneg %p272
      $region38: #{tpu_custom_call.1} parent=5 // pred_check_branch
        %275 = sbr.rel (%p273) target = $region40
      $region39: #{tpu_custom_call.1} parent=5 // pred_region
        // Predicated region
        $region41: #{tpu_custom_call.1} parent=39 // pred_check
          %p276 = pneg %p51
        $region42: #{tpu_custom_call.1} parent=39 // pred_check_branch
          %278 = sbr.rel (%p276) target = $region44
        $region43: #{tpu_custom_call.1} parent=39 // pred_region
          %p279 = scmp.lt.s32.totalorder %s24, 1
          %s280 = scalar_select %p279, %s24, 1
          %p281 = scmp.lt.s32.totalorder %s25, 0
          %s282 = scalar_select %p281, %s25, 0
          %s283 = smul.addr %s280, 2
          %s284 = sadd.s32 %s282, %s283
          %s285 = smul.addr %s284, 8
          %s286 = scalar_lea.vmem %s0, %s285
        $region44: #{tpu_custom_call.1} parent=39 // pred_fallthru
          _
        // Predicated region
        $region45: #{tpu_custom_call.1} parent=39 // pred_check
          %p287 = pneg %p79
        $region46: #{tpu_custom_call.1} parent=39 // pred_check_branch
          %289 = sbr.rel (%p287) target = $region48
        $region47: #{tpu_custom_call.1} parent=39 // pred_region
          %p290 = scmp.lt.s32.totalorder %s24, 1
          %s291 = scalar_select %p290, %s24, 1
          %p292 = scmp.lt.s32.totalorder %s25, 0
          %s293 = scalar_select %p292, %s25, 0
          %s294 = smul.addr %s291, 4
          %s295 = sadd.s32 %s293, %s294
          %s296 = smul.addr %s295, 8
          %s297 = scalar_lea.vmem %s1, %s296
        $region48: #{tpu_custom_call.1} parent=39 // pred_fallthru
          _
      $region40: #{tpu_custom_call.1} parent=5 // pred_fallthru
        _
      %p298 = scmp.le.s32.totalorder 1, %s17
      %p299 = scmp.lt.s32.totalorder %s17, 3
      %p300 = pnand %p298, %p299
      %p301 = pneg %p300
      // Predicated region
      $region49: #{tpu_custom_call.1} parent=5 // pred_check
        _
      $region50: #{tpu_custom_call.1} parent=5 // pred_check_branch
        %303 = sbr.rel (%p300) target = $region52
      $region51: #{tpu_custom_call.1} parent=5 // pred_region
        %s304 = ssub.s32 %s17, 1
        %p305 = scmp.lt.s32.totalorder %s26, 1
        %s306 = scalar_select %p305, %s26, 1
        %p307 = scmp.lt.s32.totalorder %s27, 0
        %s308 = scalar_select %p307, %s27, 0
        %s309 = smul.addr %s306, 2
        %s310 = sadd.s32 %s308, %s309
        %s311 = smul.addr %s310, 8
        %s312 = scalar_lea.vmem %s0, %s311
        %p313 = pneg %p57
        %p314 = pneg %p54
        %p315 = scmp.lt.s32.totalorder %s26, 1
        %s316 = scalar_select %p315, %s26, 1
        %p317 = scmp.lt.s32.totalorder %s27, 0
        %s318 = scalar_select %p317, %s27, 0
        %s319 = smul.addr %s316, 4
        %s320 = sadd.s32 %s318, %s319
        %s321 = smul.addr %s320, 8
        %s322 = scalar_lea.vmem %s1, %s321
        %p323 = pneg %p85
        %p324 = pneg %p82
        %p325 = pneg %p106
        %p326 = pneg %p103
        %p327 = pneg %p127
        %p328 = pneg %p124
        %p329 = pneg %p148
        %p330 = pneg %p145
        %p331 = pneg %p169
        %p332 = pneg %p166
        %p333 = pneg %p190
        %p334 = pneg %p187
        %p335 = pneg %p211
        %p336 = pneg %p208
        %p337 = pneg %p239
        %p338 = pneg %p236
        %s339 = sand.u32 %s226, 1
        %s340 = scalar_lea.sflag [#allocation3], %s339
        %s341 = sand.u32 %s226, 1
        %s342 = smul.addr %s341, 64
        %s343 = scalar_lea.vmem [#allocation2], %s342
        %p344 = scmp.lt.s32.totalorder %s26, 1
        %s345 = scalar_select %p344, %s26, 1
        %p346 = scmp.lt.s32.totalorder %s27, 0
        %s347 = scalar_select %p346, %s27, 0
        %s348 = smul.addr %s345, 2
        %s349 = sadd.s32 %s347, %s348
        %s350 = smul.addr %s349, 8
        %s351 = scalar_lea.vmem %s0, %s350
        %p352 = scmp.lt.s32.totalorder %s26, 1
        %s353 = scalar_select %p352, %s26, 1
        %p354 = scmp.lt.s32.totalorder %s27, 0
        %s355 = scalar_select %p354, %s27, 0
        %s356 = smul.addr %s353, 4
        %s357 = sadd.s32 %s355, %s356
        %s358 = smul.addr %s357, 8
        %s359 = scalar_lea.vmem %s1, %s358
        %v360 = vld [vmem:[%s351] sm:$0xff]
        %v361 = vld [vmem:[%s351 + $0x8] sm:$0xff]
        %v362 = vld [vmem:[%s2] sm:$0xff]
        %v363 = vld [vmem:[%s2 + $0x8] sm:$0xff]
        %v364 = vld [vmem:[%s2 + $0x10] sm:$0xff]
        %v365 = vld [vmem:[%s2 + $0x18] sm:$0xff]
        %v366 = vld [vmem:[%s3] sm:$0xff]
        %v367 = vld [vmem:[%s3 + $0x8] sm:$0xff]
        %v368 = vld [vmem:[%s3 + $0x10] sm:$0xff]
        %v369 = vld [vmem:[%s3 + $0x18] sm:$0xff]
        %371 = vset.pattern.permute.xlu0 0
        %372 = vperm.xlu0 %371, %v366
        %v373 = vpop.permute.xlu0 %372
        %376 = vset.pattern.permute.xlu0 0
        %377 = vperm.xlu0 %376, %v367
        %v378 = vpop.permute.xlu0 %377
        %381 = vset.pattern.permute.xlu0 0
        %382 = vperm.xlu0 %381, %v368
        %v383 = vpop.permute.xlu0 %382
        %386 = vset.pattern.permute.xlu0 0
        %387 = vperm.xlu0 %386, %v369
        %v388 = vpop.permute.xlu0 %387
        %vm390 = vcmask 130048
        %v392 = vsel %vm390, %v362, 0
        %v395 = vsel %vm390, %v363, 0
        %v398 = vsel %vm390, %v364, 0
        %v401 = vsel %vm390, %v365, 0
        %403 = vmatprep.subr.mxu0 0.0
        %404 = vmatpush1.msra.mxu0 0.0
        %405 = vmatprep.subr.mxu0 0.0
        %406 = vmatpush1.msra.mxu0 0.0
        %407 = vmatprep.subr.mxu0 0.0
        %408 = vmatpush1.msra.mxu0 0.0
        %409 = vmatprep.subr.mxu0 0.0
        %410 = vmatpush1.msra.mxu0 0.0
        %411 = vmatprep.subr.mxu0 0.0
        %412 = vmatpush1.msra.mxu0 0.0
        %413 = vmatprep.subr.mxu0 0.0
        %414 = vmatpush1.msra.mxu0 0.0
        %415 = vmatprep.subr.mxu0 0.0
        %416 = vmatpush1.msra.mxu0 0.0
        %417 = vmatprep.subr.mxu0 0.0
        %418 = vmatpush1.msra.mxu0 0.0
        %419 = vmatprep.subr.mxu0 0.0
        %420 = vmatpush1.msra.mxu0 0.0
        %421 = vmatprep.subr.mxu0 0.0
        %422 = vmatpush1.msra.mxu0 0.0
        %423 = vmatprep.subr.mxu0 0.0
        %424 = vmatpush1.msra.mxu0 0.0
        %425 = vmatprep.subr.mxu0 0.0
        %426 = vmatpush1.msra.mxu0 0.0
        %427 = vmatprep.subr.mxu0 0.0
        %428 = vmatpush1.msra.mxu0 0.0
        %429 = vmatprep.subr.mxu0 0.0
        %430 = vmatpush1.msra.mxu0 0.0
        %431 = vmatprep.subr.mxu0 0.0
        %432 = vmatpush1.msra.mxu0 %v361
        %433 = vmatprep.subr.mxu0 0.0
        %434 = vmatpush1.msra.mxu0 %v360
        %435 = vmatprep.subr.mxu0 0.0
        %436 = vmatpush2.msra.mxu0 0.0
        %437 = vmatprep.subr.mxu0 0.0
        %438 = vmatpush2.msra.mxu0 0.0
        %439 = vmatprep.subr.mxu0 0.0
        %440 = vmatpush2.msra.mxu0 0.0
        %441 = vmatprep.subr.mxu0 0.0
        %442 = vmatpush2.msra.mxu0 0.0
        %443 = vmatprep.subr.mxu0 0.0
        %444 = vmatpush2.msra.mxu0 0.0
        %445 = vmatprep.subr.mxu0 0.0
        %446 = vmatpush2.msra.mxu0 0.0
        %447 = vmatprep.subr.mxu0 0.0
        %448 = vmatpush2.msra.mxu0 0.0
        %449 = vmatprep.subr.mxu0 0.0
        %450 = vmatpush2.msra.mxu0 0.0
        %451 = vmatprep.subr.mxu0 0.0
        %452 = vmatpush2.msra.mxu0 0.0
        %453 = vmatprep.subr.mxu0 0.0
        %454 = vmatpush2.msra.mxu0 0.0
        %455 = vmatprep.subr.mxu0 0.0
        %456 = vmatpush2.msra.mxu0 0.0
        %457 = vmatprep.subr.mxu0 0.0
        %458 = vmatpush2.msra.mxu0 0.0
        %459 = vmatprep.subr.mxu0 0.0
        %460 = vmatpush2.msra.mxu0 0.0
        %461 = vmatprep.subr.mxu0 0.0
        %462 = vmatpush2.msra.mxu0 0.0
        %463 = vmatprep.subr.mxu0 0.0
        %464 = vmatpush2.msra.mxu0 0.0
        %465 = vmatprep.subr.mxu0 0.0
        %466 = vmatpush2.msra.mxu0 0.0
        %467 = vmatprep.mubr.f32.mxu0 0.0
        %468 = vmatmul.mubr.f32.gmra.mxu0 %v392
        %v469 = vpop.f32.mrf.mxu0
        %v470 = vadd.f32 %v373, %v469
        %v471 = vpop.f32.mrf.mxu0
        %472 = vmatprep.mubr.f32.mxu0 0.0
        %473 = vmatmul.mubr.f32.gmra.mxu0 %v395
        %v474 = vpop.f32.mrf.mxu0
        %v475 = vadd.f32 %v378, %v474
        %v476 = vpop.f32.mrf.mxu0
        %477 = vmatprep.mubr.f32.mxu0 0.0
        %478 = vmatmul.mubr.f32.gmra.mxu0 %v398
        %v479 = vpop.f32.mrf.mxu0
        %v480 = vadd.f32 %v383, %v479
        %v481 = vpop.f32.mrf.mxu0
        %482 = vmatprep.mubr.f32.mxu0 0.0
        %483 = vmatmul.mubr.f32.gmra.mxu0 %v401
        %v484 = vpop.f32.mrf.mxu0
        %v485 = vadd.f32 %v388, %v484
        %v486 = vpop.f32.mrf.mxu0
        %487 = vdwg.mxu0
        %488 = vst [vmem:[%s343] sm:$0xff] %v470
        %489 = vst [vmem:[%s343 + $0x8] sm:$0xff] %v475
        %490 = vst [vmem:[%s343 + $0x10] sm:$0xff] %v480
        %491 = vst [vmem:[%s343 + $0x18] sm:$0xff] %v485
        %v492 = vld [vmem:[%s4] sm:$0xff]
        %v493 = vld [vmem:[%s4 + $0x8] sm:$0xff]
        %v494 = vld [vmem:[%s4 + $0x10] sm:$0xff]
        %v495 = vld [vmem:[%s6] sm:$0xff]
        %v496 = vld [vmem:[%s5] sm:$0xff]
        %v497 = vld [vmem:[%s5 + $0x8] sm:$0xff]
        %v498 = vld [vmem:[%s5 + $0x10] sm:$0xff]
        %v499 = vld [vmem:[%s7] sm:$0xff]
        loop: start=0, step=1, limit=4
        $region53: #{tpu_custom_call.1} parent=51 // loop_pre_header
          _
        $region54: #{tpu_custom_call.1} parent=51 // loop_header
          %s501 = sphi 0, %s505
          %p502 = scmp.ge.s32.totalorder %s501, 4
        $region55: #{tpu_custom_call.1} parent=51 // loop_header_branch
          %504 = sbr.rel (%p502) target = $region59
        $region56: #{tpu_custom_call.1} parent=51 // loop_body
          %s506 = smul.u32 %s501, 8
          %s507 = scalar_lea.vmem %s343, %s506 [#allocation2]
          %v508 = vld [vmem:[%s507] sm:$0xff]
          %s509 = scalar_lea.vmem %s359, %s506
          %v510 = vld [vmem:[%s509] sm:$0xff]
          %512 = vset.pattern.permute.xlu0 0
          %513 = vperm.xlu0 %512, %v496
          %v514 = vpop.permute.xlu0 %513
          %517 = vset.pattern.permute.xlu0 0
          %518 = vperm.xlu0 %517, %v497
          %v519 = vpop.permute.xlu0 %518
          %522 = vset.pattern.permute.xlu0 0
          %523 = vperm.xlu0 %522, %v498
          %v524 = vpop.permute.xlu0 %523
          %vm526 = vcmask 64512
          %v528 = vsel %vm526, %v492, 0
          %v531 = vsel %vm526, %v493, 0
          %v534 = vsel %vm526, %v494, 0
          %536 = vmatprep.subr.mxu0 0.0
          %537 = vmatpush1.msra.mxu0 0.0
          %538 = vmatprep.subr.mxu0 0.0
          %539 = vmatpush1.msra.mxu0 0.0
          %540 = vmatprep.subr.mxu0 0.0
          %541 = vmatpush1.msra.mxu0 0.0
          %542 = vmatprep.subr.mxu0 0.0
          %543 = vmatpush1.msra.mxu0 0.0
          %544 = vmatprep.subr.mxu0 0.0
          %545 = vmatpush1.msra.mxu0 0.0
          %546 = vmatprep.subr.mxu0 0.0
          %547 = vmatpush1.msra.mxu0 0.0
          %548 = vmatprep.subr.mxu0 0.0
          %549 = vmatpush1.msra.mxu0 0.0
          %550 = vmatprep.subr.mxu0 0.0
          %551 = vmatpush1.msra.mxu0 0.0
          %552 = vmatprep.subr.mxu0 0.0
          %553 = vmatpush1.msra.mxu0 0.0
          %554 = vmatprep.subr.mxu0 0.0
          %555 = vmatpush1.msra.mxu0 0.0
          %556 = vmatprep.subr.mxu0 0.0
          %557 = vmatpush1.msra.mxu0 0.0
          %558 = vmatprep.subr.mxu0 0.0
          %559 = vmatpush1.msra.mxu0 0.0
          %560 = vmatprep.subr.mxu0 0.0
          %561 = vmatpush1.msra.mxu0 0.0
          %562 = vmatprep.subr.mxu0 0.0
          %563 = vmatpush1.msra.mxu0 0.0
          %564 = vmatprep.subr.mxu0 0.0
          %565 = vmatpush1.msra.mxu0 0.0
          %566 = vmatprep.subr.mxu0 0.0
          %567 = vmatpush1.msra.mxu0 %v508
          %568 = vmatprep.subr.mxu0 0.0
          %569 = vmatpush2.msra.mxu0 0.0
          %570 = vmatprep.subr.mxu0 0.0
          %571 = vmatpush2.msra.mxu0 0.0
          %572 = vmatprep.subr.mxu0 0.0
          %573 = vmatpush2.msra.mxu0 0.0
          %574 = vmatprep.subr.mxu0 0.0
          %575 = vmatpush2.msra.mxu0 0.0
          %576 = vmatprep.subr.mxu0 0.0
          %577 = vmatpush2.msra.mxu0 0.0
          %578 = vmatprep.subr.mxu0 0.0
          %579 = vmatpush2.msra.mxu0 0.0
          %580 = vmatprep.subr.mxu0 0.0
          %581 = vmatpush2.msra.mxu0 0.0
          %582 = vmatprep.subr.mxu0 0.0
          %583 = vmatpush2.msra.mxu0 0.0
          %584 = vmatprep.subr.mxu0 0.0
          %585 = vmatpush2.msra.mxu0 0.0
          %586 = vmatprep.subr.mxu0 0.0
          %587 = vmatpush2.msra.mxu0 0.0
          %588 = vmatprep.subr.mxu0 0.0
          %589 = vmatpush2.msra.mxu0 0.0
          %590 = vmatprep.subr.mxu0 0.0
          %591 = vmatpush2.msra.mxu0 0.0
          %592 = vmatprep.subr.mxu0 0.0
          %593 = vmatpush2.msra.mxu0 0.0
          %594 = vmatprep.subr.mxu0 0.0
          %595 = vmatpush2.msra.mxu0 0.0
          %596 = vmatprep.subr.mxu0 0.0
          %597 = vmatpush2.msra.mxu0 0.0
          %598 = vmatprep.subr.mxu0 0.0
          %599 = vmatpush2.msra.mxu0 0.0
          %600 = vmatprep.mubr.f32.mxu0 0.0
          %601 = vmatmul.mubr.f32.gmra.mxu0 %v528
          %v602 = vpop.f32.mrf.mxu0
          %v603 = vadd.f32 %v514, %v602
          %v604 = vpop.f32.mrf.mxu0
          %605 = vmatprep.mubr.f32.mxu0 0.0
          %606 = vmatmul.mubr.f32.gmra.mxu0 %v531
          %v607 = vpop.f32.mrf.mxu0
          %v608 = vadd.f32 %v519, %v607
          %v609 = vpop.f32.mrf.mxu0
          %610 = vmatprep.mubr.f32.mxu0 0.0
          %611 = vmatmul.mubr.f32.gmra.mxu0 %v534
          %v612 = vpop.f32.mrf.mxu0
          %v613 = vadd.f32 %v524, %v612
          %v614 = vpop.f32.mrf.mxu0
          %615 = vdwg.mxu0
          %v616 = vadd.f32 %v603, %v510
          %618 = vset.pattern.permute.xlu0 0
          %619 = vperm.xlu0 %618, %v499
          %v620 = vpop.permute.xlu0 %619
          %v623 = vsel %vm526, %v495, 0
          %625 = vmatprep.subr.mxu0 0.0
          %626 = vmatpush1.msra.mxu0 0.0
          %627 = vmatprep.subr.mxu0 0.0
          %628 = vmatpush1.msra.mxu0 0.0
          %629 = vmatprep.subr.mxu0 0.0
          %630 = vmatpush1.msra.mxu0 0.0
          %631 = vmatprep.subr.mxu0 0.0
          %632 = vmatpush1.msra.mxu0 0.0
          %633 = vmatprep.subr.mxu0 0.0
          %634 = vmatpush1.msra.mxu0 0.0
          %635 = vmatprep.subr.mxu0 0.0
          %636 = vmatpush1.msra.mxu0 0.0
          %637 = vmatprep.subr.mxu0 0.0
          %638 = vmatpush1.msra.mxu0 0.0
          %639 = vmatprep.subr.mxu0 0.0
          %640 = vmatpush1.msra.mxu0 0.0
          %641 = vmatprep.subr.mxu0 0.0
          %642 = vmatpush1.msra.mxu0 0.0
          %643 = vmatprep.subr.mxu0 0.0
          %644 = vmatpush1.msra.mxu0 0.0
          %645 = vmatprep.subr.mxu0 0.0
          %646 = vmatpush1.msra.mxu0 0.0
          %647 = vmatprep.subr.mxu0 0.0
          %648 = vmatpush1.msra.mxu0 0.0
          %649 = vmatprep.subr.mxu0 0.0
          %650 = vmatpush1.msra.mxu0 0.0
          %651 = vmatprep.subr.mxu0 0.0
          %652 = vmatpush1.msra.mxu0 0.0
          %653 = vmatprep.subr.mxu0 0.0
          %654 = vmatpush1.msra.mxu0 0.0
          %655 = vmatprep.subr.mxu0 0.0
          %656 = vmatpush1.msra.mxu0 %v616
          %657 = vmatprep.subr.mxu0 0.0
          %658 = vmatpush2.msra.mxu0 0.0
          %659 = vmatprep.subr.mxu0 0.0
          %660 = vmatpush2.msra.mxu0 0.0
          %661 = vmatprep.subr.mxu0 0.0
          %662 = vmatpush2.msra.mxu0 0.0
          %663 = vmatprep.subr.mxu0 0.0
          %664 = vmatpush2.msra.mxu0 0.0
          %665 = vmatprep.subr.mxu0 0.0
          %666 = vmatpush2.msra.mxu0 0.0
          %667 = vmatprep.subr.mxu0 0.0
          %668 = vmatpush2.msra.mxu0 0.0
          %669 = vmatprep.subr.mxu0 0.0
          %670 = vmatpush2.msra.mxu0 0.0
          %671 = vmatprep.subr.mxu0 0.0
          %672 = vmatpush2.msra.mxu0 0.0
          %673 = vmatprep.subr.mxu0 0.0
          %674 = vmatpush2.msra.mxu0 0.0
          %675 = vmatprep.subr.mxu0 0.0
          %676 = vmatpush2.msra.mxu0 0.0
          %677 = vmatprep.subr.mxu0 0.0
          %678 = vmatpush2.msra.mxu0 0.0
          %679 = vmatprep.subr.mxu0 0.0
          %680 = vmatpush2.msra.mxu0 0.0
          %681 = vmatprep.subr.mxu0 0.0
          %682 = vmatpush2.msra.mxu0 0.0
          %683 = vmatprep.subr.mxu0 0.0
          %684 = vmatpush2.msra.mxu0 0.0
          %685 = vmatprep.subr.mxu0 0.0
          %686 = vmatpush2.msra.mxu0 0.0
          %687 = vmatprep.subr.mxu0 0.0
          %688 = vmatpush2.msra.mxu0 0.0
          %689 = vmatprep.mubr.f32.mxu0 0.0
          %690 = vmatmul.mubr.f32.gmra.mxu0 %v623
          %v691 = vpop.f32.mrf.mxu0
          %v692 = vadd.f32 %v620, %v691
          %v693 = vpop.f32.mrf.mxu0
          %694 = vdwg.mxu0
          %v695 = vxor.u32 %v692, 2147483648
          %v696 = vmul.f32 %v695, 1.442695
          %v697 = vpow.pop %v696
          %v698 = vadd.f32 %v697, 1.0
          %v699 = vrcp.pop %v698
          %v700 = vmul.f32 1.0, %v699
          %v701 = vmul.f32 %v700, %v510
          %v702 = vxor.u32 %v608, 2147483648
          %v703 = vmul.f32 %v702, 1.442695
          %v704 = vpow.pop %v703
          %v705 = vadd.f32 %v704, 1.0
          %v706 = vrcp.pop %v705
          %v707 = vmul.f32 1.0, %v706
          %v708 = vtanh.pop %v613
          %v709 = vmul.f32 %v707, %v708
          %v710 = vadd.f32 %v701, %v709
          %vm711 = vcmp.ge.f32.partialorder %v710, 0.0
          %v712 = vmul.f32 %v710, 0.01
          %v713 = vsel %vm711, %v710, %v712
          %s714 = sadd.s32 %s506, 32
          %s715 = scalar_lea.vmem %s343, %s714 [#allocation2]
          %716 = vst [vmem:[%s715] sm:$0xff] %v713
        $region57: #{tpu_custom_call.1} parent=51 // loop_footer
          %s505 = sadd.s32 1, %s501
        $region58: #{tpu_custom_call.1} parent=51 // loop_footer_branch
          %500 = sbr.rel target = $region54
        $region59: #{tpu_custom_call.1} parent=51 // loop_exit
          _
        %s717 = sand.u32 %s226, 1
        %s718 = scalar_lea.sflag [#allocation3], %s717
        %s719 = sand.u32 %s226, 1
        %s720 = smul.addr %s719, 64
        %s721 = scalar_lea.vmem [#allocation2], %s720
        // Predicated region
        $region60: #{tpu_custom_call.1} parent=51 // pred_check
          %p722 = pneg %p236
        $region61: #{tpu_custom_call.1} parent=51 // pred_check_branch
          %724 = sbr.rel (%p722) target = $region63
        $region62: #{tpu_custom_call.1} parent=51 // pred_region
          %s726 = ssub.s32 1024, 1024
          %727 = vsyncadd %s718, %s726
          %s728 = smul.addr %s26, 8
          %s729 = sadd.s32 %s27, %s728
          %s730 = smul.addr %s729, 128
          %s731 = scalar_lea.hbm %s8, %s730
          %s732 = sshll.u32 %s721, 4
          %s733 = int_to_ptr.vmem [resolvable:$true] %s732
          %738 = dma.vmem_to_hbm [thread:$0]  %s733, 1024, %s731, %s718, 128, 128, 8
        $region63: #{tpu_custom_call.1} parent=51 // pred_fallthru
          _
      $region52: #{tpu_custom_call.1} parent=5 // pred_fallthru
        _
      %p739 = scmp.le.s32.totalorder 2, %s17
      // Predicated region
      $region64: #{tpu_custom_call.1} parent=5 // pred_check
        %p740 = pneg %p739
      $region65: #{tpu_custom_call.1} parent=5 // pred_check_branch
        %742 = sbr.rel (%p740) target = $region67
      $region66: #{tpu_custom_call.1} parent=5 // pred_region
        %s743 = ssub.s32 %s17, 2
        // Predicated region
        $region68: #{tpu_custom_call.1} parent=66 // pred_check
          %p744 = pneg %p242
        $region69: #{tpu_custom_call.1} parent=66 // pred_check_branch
          %746 = sbr.rel (%p744) target = $region71
        $region70: #{tpu_custom_call.1} parent=66 // pred_region
          %s747 = sand.u32 %s227, 1
          %s748 = scalar_lea.sflag [#allocation3], %s747
          %s749 = sand.u32 %s227, 1
          %s750 = smul.addr %s749, 64
          %s751 = scalar_lea.vmem [#allocation2], %s750
          %752 = dma.done %s748, 1024
        $region71: #{tpu_custom_call.1} parent=66 // pred_fallthru
          _
      $region67: #{tpu_custom_call.1} parent=5 // pred_fallthru
        _
    $region6: #{tpu_custom_call.1} parent=1 // loop_footer
      %s21 = sadd.s32 1, %s17
    $region7: #{tpu_custom_call.1} parent=1 // loop_footer_branch
      %16 = sbr.rel target = $region3
    $region8: #{tpu_custom_call.1} parent=1 // loop_exit
      _
    %753 = vsyncpa [#allocation3], 1
    %s754 = scalar_lea.sflag [#allocation3], 1
    %755 = vsyncpa %s754, 1

</llo_original>
